<compile_context>
chip_gen: v5e
topology: v5e:2x2
jax: 0.10.0
libtpu: 0.0.40
codegen_flags: <defaults>
</compile_context>

<pallas_src>
import jax
import jax.numpy as jnp
import numpy as np
from jax import lax
from jax.experimental import pallas as pl
from jax.experimental.pallas import tpu as pltpu

_LANE = 128
_TARGET_STEP_BYTES = 2 * 1024 * 1024      # ~2 MiB of logits DMA per grid step
_MIN_TS = 8 * 1024                        # 8K lanes
_MAX_TS = 64 * 1024                       # 64K lanes


def _round_up(x, m):
    return ((x + m - 1) // m) * m


def _vmem_capacity_bytes():
    try:
        return int(pltpu.get_tpu_info().vmem_capacity_bytes)
    except Exception:
        return 64 * 1024 * 1024           # conservative: v7x per-TensorCore VMEM


def _has_two_tensorcores():
    try:
        kind = jax.devices()[0].device_kind.lower()
    except Exception:
        return False
    return any(t in kind for t in ("v4", "v5p", "v7"))


def tversky_rce_loss(net_output, target, *, weight_ce=1.0, weight_dice=1.0,
                     smooth=1.0, fp=0.8, fn=0.2, alpha=1.0, temp=1.0,
                     eps=1e-10):
    """Tversky_RCELoss forward (ignore_label=None, batch_dice=False, do_bg=True)."""
    # TODO(synk): RegionLoss base class source is not provided; standard RCE
    # defaults are assumed (mode='all', temp=1.0, alpha=1.0, EPS=1e-10); only
    # temp == 1.0 is supported (pred_proportion then reuses the same softmax).
    # TODO(synk): AllGatherGrad / ddp branch unused (batch_dice=False);
    # ignore_label branch unused (ignore_label=None); loss_mask unused (None).
    B, C, H, W = net_output.shape
    S = H * W

    logits = net_output.reshape(B, C, S)      # native dtype, no copy, no pad
    labels = target.reshape(B, 1, S)          # native dtype, no copy, no pad

    logit_it = jnp.dtype(net_output.dtype).itemsize
    lab_it = jnp.dtype(target.dtype).itemsize

    # ---- VMEM budget & byte-targeted spatial tile size ----
    vmem_cap = _vmem_capacity_bytes()
    vmem_limit = int(min((vmem_cap * 3) // 4, 100 * 1024 * 1024))
    # bytes resident per spatial lane: double-buffered input tiles + f32 scratch
    # accumulators + generous headroom for the compiler's f32 temporaries
    per_lane = 2 * (C * logit_it + lab_it) + (2 * C + 1) * 4 + 8 * C * 4 + 64
    ts_cap = max(_LANE, ((vmem_limit * 7 // 10) // per_lane) // _LANE * _LANE)

    ts_target = _TARGET_STEP_BYTES // max(1, C * logit_it)
    ts_target = max(_MIN_TS, min(_MAX_TS, ts_target))
    TS = min(ts_target, ts_cap, _round_up(S, _LANE))
    TS = max(_LANE, (TS // _LANE) * _LANE)

    n_chunks = pl.cdiv(S, TS)
    # Only split spatial chunks into two parallel output streams on
    # dual-TensorCore chips, and only when the batch axis alone can't feed them.
    n_outer = 2 if (B == 1 and n_chunks >= 2 and n_chunks % 2 == 0
                    and _has_two_tensorcores()) else 1
    n_inner = n_chunks // n_outer
    n_invalid = n_outer * n_inner * TS - S        # OOB lanes in the ragged tail
    need_mask = n_invalid > 0

    def kernel(logits_ref, labels_ref, inter_ref, spred_ref, ce_ref,
               acc_inter, acc_spred, acc_ce):
        s_blk = pl.program_id(2)

        @pl.when(s_blk == 0)
        def _init():
            acc_inter[...] = jnp.zeros_like(acc_inter)
            acc_spred[...] = jnp.zeros_like(acc_spred)
            acc_ce[...] = jnp.zeros_like(acc_ce)

        x = logits_ref[0].astype(jnp.float32)     # (C, TS)
        lab = labels_ref[0].astype(jnp.int32)     # (1, TS)

        if need_mask:
            # Ragged tail handled in-kernel (no wrapper-side jnp.pad).  Sanitize
            # garbage lanes BEFORE exp so NaN/Inf cannot propagate.  Sanitized
            # lanes then contribute exactly 1/C to sum_pred and log(C) to CE
            # (and nothing to intersect), which is subtracted in the glue.
            chunk = pl.program_id(1) * pl.num_programs(2) + s_blk
            lane = lax.broadcasted_iota(jnp.int32, (1, TS), 1)
            valid = lane < (S - chunk * TS)
            x = jnp.where(valid, x, 0.0)
            lab = jnp.where(valid, lab, -1)

        ch = lax.broadcasted_iota(jnp.int32, (C, TS), 0)
        onehot = ch == lab                        # (C, TS) bool

        # numerically stable softmax / log-softmax over channels
        m = jnp.max(x, axis=0, keepdims=True)     # (1, TS) sublane reduce
        xs = x - m
        e = jnp.exp(xs)                           # EUP
        se = jnp.sum(e, axis=0, keepdims=True)    # (1, TS) sublane reduce
        p = e * pl.reciprocal(se, approx=True)    # probs (Tversky path only)

        acc_inter[...] += jnp.where(onehot, p, 0.0)
        acc_spred[...] += p
        x_at_y = jnp.sum(jnp.where(onehot, xs, 0.0), axis=0, keepdims=True)
        acc_ce[...] += jnp.log(se) - x_at_y       # exact -log softmax(x)[y]

        @pl.when(s_blk == pl.num_programs(2) - 1)
        def _finalize():
            # one lane collapse per (batch, outer-chunk); tiny lane-1 outputs
            inter_ref[0] = jnp.sum(acc_inter[...], axis=-1, keepdims=True)
            spred_ref[0] = jnp.sum(acc_spred[...], axis=-1, keepdims=True)
            ce_ref[0] = jnp.sum(acc_ce[...], axis=-1, keepdims=True)

    NC = B * n_outer
    out_shapes = (
        jax.ShapeDtypeStruct((NC, C, 1), jnp.float32),   # intersect
        jax.ShapeDtypeStruct((NC, C, 1), jnp.float32),   # sum_pred
        jax.ShapeDtypeStruct((NC, 1, 1), jnp.float32),   # CE sum
    )
    stat_spec = pl.BlockSpec((1, C, 1), lambda b, o, s: (b * n_outer + o, 0, 0))
    ce_spec = pl.BlockSpec((1, 1, 1), lambda b, o, s: (b * n_outer + o, 0, 0))

    inter_p, spred_p, ce_p = pl.pallas_call(
        kernel,
        out_shape=out_shapes,
        grid_spec=pltpu.PrefetchScalarGridSpec(
            num_scalar_prefetch=0,
            grid=(B, n_outer, n_inner),
            in_specs=[
                pl.BlockSpec((1, C, TS), lambda b, o, s: (b, 0, o * n_inner + s)),
                pl.BlockSpec((1, 1, TS), lambda b, o, s: (b, 0, o * n_inner + s)),
            ],
            out_specs=[stat_spec, stat_spec, ce_spec],
            scratch_shapes=[
                pltpu.VMEM((C, TS), jnp.float32),
                pltpu.VMEM((C, TS), jnp.float32),
                pltpu.VMEM((1, TS), jnp.float32),
            ],
        ),
        compiler_params=pltpu.CompilerParams(
            dimension_semantics=("parallel", "parallel", "arbitrary"),
            vmem_limit_bytes=vmem_limit),
    )(logits, labels)

    # ---- tiny glue: combine chunk partials + static ragged-tail corrections ----
    intersect = inter_p[..., 0].reshape(B, n_outer, C).sum(axis=1)   # (B, C)
    sum_pred = spred_p[..., 0].reshape(B, n_outer, C).sum(axis=1)    # (B, C)
    ce_sum = ce_p[..., 0].reshape(B, n_outer).sum(axis=1)            # (B,)
    if need_mask:
        sum_pred = sum_pred - n_invalid / C
        ce_sum = ce_sum - n_invalid * float(np.log(C))

    # sum_gt is a per-class pixel count: one cheap fused pass over the label map
    classes = jnp.arange(C, dtype=jnp.int32).reshape(1, C, 1)
    sum_gt = jnp.sum((labels.astype(jnp.int32) == classes).astype(jnp.float32),
                     axis=-1)                                        # (B, C)

    # ---- MemoryEfficientTverskyLoss (apply_nonlin=softmax, fp=0.8, fn=0.2) ----
    denominator = intersect + fp * sum_pred + fn * sum_gt
    tversky_index = intersect / (denominator + smooth)
    dc_loss = jnp.mean(1.0 - tversky_index)

    # ---- RCELoss = CrossEntropy(mean) + alpha * |pred_prop - gt_prop|.mean() ----
    loss_ce = jnp.sum(ce_sum) / (B * S)
    cardinality = float(S)
    gt_prop = (sum_gt + eps) / (cardinality + eps)
    pred_prop = (sum_pred + eps) / (cardinality + eps)   # temp == 1.0
    loss_reg = jnp.mean(jnp.abs(pred_prop - gt_prop))
    ce_loss = loss_ce + alpha * loss_reg

    return weight_ce * ce_loss + weight_dice * dc_loss


def _reference_loss(net_output, target, *, weight_ce=1.0, weight_dice=1.0,
                    smooth=1.0, fp=0.8, fn=0.2, alpha=1.0, eps=1e-10):
    """Pure-JAX reference of the same forward pass (for verification)."""
    B, C, H, W = net_output.shape
    x = jax.nn.softmax(net_output.astype(jnp.float32), axis=1)
    lab = target[:, 0].astype(jnp.int32)
    y1h = jax.nn.one_hot(lab, C, axis=1, dtype=jnp.float32)
    axes = (2, 3)
    intersect = jnp.sum(x * y1h, axes)
    sum_pred = jnp.sum(x, axes)
    sum_gt = jnp.sum(y1h, axes)
    tversky = intersect / (intersect + fp * sum_pred + fn * sum_gt + smooth)
    dc_loss = jnp.mean(1.0 - tversky)
    logp = jax.nn.log_softmax(net_output.astype(jnp.float32), axis=1)
    loss_ce = -jnp.mean(jnp.sum(logp * y1h, axis=1))
    gt_prop = (sum_gt + eps) / (H * W + eps)
    pred_prop = (sum_pred + eps) / (H * W + eps)
    loss_reg = jnp.mean(jnp.abs(pred_prop - gt_prop))
    ce_loss = loss_ce + alpha * loss_reg
    return weight_ce * ce_loss + weight_dice * dc_loss


if __name__ == "__main__":
    key = jax.random.PRNGKey(0)
    k1, k2, k3, k4 = jax.random.split(key, 4)

    # Case 1: lane-aligned spatial extent (no ragged tail)
    B, C, H, W = 2, 4, 16, 16
    net_output = jax.random.normal(k1, (B, C, H, W), dtype=jnp.float32)
    target = jax.random.randint(k2, (B, 1, H, W), 0, C).astype(jnp.float32)
    loss = jax.block_until_ready(jax.jit(tversky_rce_loss)(net_output, target))
    ref = _reference_loss(net_output, target)
    # tolerance accounts for pl.reciprocal(approx=True) in the softmax (Tversky
    # path only; CE path is exact via the log-sum-exp formulation)
    assert np.allclose(np.asarray(loss), np.asarray(ref), rtol=2e-3, atol=1e-3), \
        (float(loss), float(ref))

    # Case 2: ragged spatial extent — exercises the in-kernel tail masking and
    # glue corrections that replaced the wrapper-side jnp.pad.
    B2, C2, H2, W2 = 2, 3, 9, 10
    net_output2 = jax.random.normal(k3, (B2, C2, H2, W2), dtype=jnp.float32)
    target2 = jax.random.randint(k4, (B2, 1, H2, W2), 0, C2).astype(jnp.float32)
    loss2 = jax.block_until_ready(jax.jit(tversky_rce_loss)(net_output2, target2))
    ref2 = _reference_loss(net_output2, target2)
    assert np.allclose(np.asarray(loss2), np.asarray(ref2), rtol=2e-3, atol=1e-3), \
        (float(loss2), float(ref2))

    print("KERNEL_OK")
</pallas_src>

<mosaic_0001>
module attributes {stable_mosaic.version = 11 : i64} {
  func.func @kernel(%arg0: i32, %arg1: i32, %arg2: i32, %arg3: memref<1x4x256xf32, #tpu.memory_space<vmem>>, %arg4: memref<1x1x256xf32, #tpu.memory_space<vmem>>, %arg5: memref<1x4x1xf32, #tpu.memory_space<vmem>>, %arg6: memref<1x4x1xf32, #tpu.memory_space<vmem>>, %arg7: memref<1x1x1xf32, #tpu.memory_space<vmem>>, %arg8: memref<4x256xf32, #tpu.memory_space<vmem>>, %arg9: memref<4x256xf32, #tpu.memory_space<vmem>>, %arg10: memref<1x256xf32, #tpu.memory_space<vmem>>) attributes {dimension_semantics = [#tpu.dimension_semantics<parallel>, #tpu.dimension_semantics<parallel>, #tpu.dimension_semantics<arbitrary>], iteration_bounds = array<i64: 2, 1, 1>, scalar_prefetch = 0 : i64, scratch_operands = 3 : i64, tpu.core_type = #tpu.core_type<tc>, window_params = [{transform_indices = @transform_0, window_bounds = array<i64: 1, 4, 256>}, {transform_indices = @transform_1, window_bounds = array<i64: 1, 1, 256>}, {transform_indices = @transform_2, window_bounds = array<i64: 1, 4, 1>}, {transform_indices = @transform_3, window_bounds = array<i64: 1, 4, 1>}, {transform_indices = @transform_4, window_bounds = array<i64: 1, 1, 1>}]} {
    %c0_i32 = arith.constant 0 : i32
    %0 = arith.cmpi eq, %arg2, %c0_i32 : i32
    %1 = arith.extui %0 : i1 to i32
    %c0_i32_0 = arith.constant 0 : i32
    %2 = arith.cmpi ne, %1, %c0_i32_0 : i32
    scf.if %2 {
      %cst_24 = arith.constant 0.000000e+00 : f32
      %41 = vector.broadcast %cst_24 : f32 to vector<4x256xf32>
      %c0_25 = arith.constant 0 : index
      %c0_26 = arith.constant 0 : index
      %42 = vector.load %arg8[%c0_25, %c0_26] : memref<4x256xf32, #tpu.memory_space<vmem>>, vector<4x256xf32>
      tpu.vector_store %arg8[%c0_25, %c0_26], %41 {strides = array<i32>} : memref<4x256xf32, #tpu.memory_space<vmem>>, vector<4x256xf32>,
      %cst_27 = arith.constant 0.000000e+00 : f32
      %43 = vector.broadcast %cst_27 : f32 to vector<4x256xf32>
      %c0_28 = arith.constant 0 : index
      %c0_29 = arith.constant 0 : index
      %44 = vector.load %arg9[%c0_28, %c0_29] : memref<4x256xf32, #tpu.memory_space<vmem>>, vector<4x256xf32>
      tpu.vector_store %arg9[%c0_28, %c0_29], %43 {strides = array<i32>} : memref<4x256xf32, #tpu.memory_space<vmem>>, vector<4x256xf32>,
      %cst_30 = arith.constant 0.000000e+00 : f32
      %45 = vector.broadcast %cst_30 : f32 to vector<1x256xf32>
      %c0_31 = arith.constant 0 : index
      %c0_32 = arith.constant 0 : index
      %46 = vector.load %arg10[%c0_31, %c0_32] : memref<1x256xf32, #tpu.memory_space<vmem>>, vector<1x256xf32>
      tpu.vector_store %arg10[%c0_31, %c0_32], %45 {strides = array<i32>} : memref<1x256xf32, #tpu.memory_space<vmem>>, vector<1x256xf32>,
    } else {
    }
    %c0 = arith.constant 0 : index
    %c0_1 = arith.constant 0 : index
    %c0_2 = arith.constant 0 : index
    %3 = vector.load %arg3[%c0, %c0_1, %c0_2] : memref<1x4x256xf32, #tpu.memory_space<vmem>>, vector<1x4x256xf32>
    %4 = vector.shape_cast %3 : vector<1x4x256xf32> to vector<4x256xf32>
    %c0_3 = arith.constant 0 : index
    %c0_4 = arith.constant 0 : index
    %c0_5 = arith.constant 0 : index
    %5 = vector.load %arg4[%c0_3, %c0_4, %c0_5] : memref<1x1x256xf32, #tpu.memory_space<vmem>>, vector<1x1x256xf32>
    %6 = vector.shape_cast %5 : vector<1x1x256xf32> to vector<1x256xf32>
    %7 = arith.fptosi %6 : vector<1x256xf32> to vector<1x256xi32>
    %8 = tpu.iota {dimensions = array<i32: 0>} : vector<4x256xi32>
    %9 = vector.broadcast %7 : vector<1x256xi32> to vector<4x256xi32>
    %10 = arith.cmpi eq, %8, %9 : vector<4x256xi32>
    %cst = arith.constant dense<0xFF800000> : vector<256xf32>
    %11 = vector.multi_reduction <maximumf>, %4, %cst [0] : vector<4x256xf32> to vector<256xf32>
    %12 = vector.shape_cast %11 : vector<256xf32> to vector<1x256xf32>
    %13 = vector.broadcast %12 : vector<1x256xf32> to vector<4x256xf32>
    %14 = arith.subf %4, %13 : vector<4x256xf32>
    %15 = math.exp %14 : vector<4x256xf32>
    %cst_6 = arith.constant dense<0.000000e+00> : vector<256xf32>
    %16 = vector.multi_reduction <add>, %15, %cst_6 [0] : vector<4x256xf32> to vector<256xf32>
    %17 = vector.shape_cast %16 : vector<256xf32> to vector<1x256xf32>
    %18 = tpu.reciprocal %17 {approx = true} : vector<1x256xf32> -> vector<1x256xf32>
    %19 = vector.broadcast %18 : vector<1x256xf32> to vector<4x256xf32>
    %20 = arith.mulf %15, %19 : vector<4x256xf32>
    %c0_7 = arith.constant 0 : index
    %c0_8 = arith.constant 0 : index
    %21 = vector.load %arg8[%c0_7, %c0_8] : memref<4x256xf32, #tpu.memory_space<vmem>>, vector<4x256xf32>
    %cst_9 = arith.constant 0.000000e+00 : f32
    %22 = vector.broadcast %cst_9 : f32 to vector<4x256xf32>
    %23 = arith.select %10, %20, %22 : vector<4x256xi1>, vector<4x256xf32>
    %24 = arith.addf %21, %23 : vector<4x256xf32>
    %c0_10 = arith.constant 0 : index
    %c0_11 = arith.constant 0 : index
    %25 = vector.load %arg8[%c0_10, %c0_11] : memref<4x256xf32, #tpu.memory_space<vmem>>, vector<4x256xf32>
    tpu.vector_store %arg8[%c0_10, %c0_11], %24 {strides = array<i32>} : memref<4x256xf32, #tpu.memory_space<vmem>>, vector<4x256xf32>,
    %c0_12 = arith.constant 0 : index
    %c0_13 = arith.constant 0 : index
    %26 = vector.load %arg9[%c0_12, %c0_13] : memref<4x256xf32, #tpu.memory_space<vmem>>, vector<4x256xf32>
    %27 = arith.addf %26, %20 : vector<4x256xf32>
    %c0_14 = arith.constant 0 : index
    %c0_15 = arith.constant 0 : index
    %28 = vector.load %arg9[%c0_14, %c0_15] : memref<4x256xf32, #tpu.memory_space<vmem>>, vector<4x256xf32>
    tpu.vector_store %arg9[%c0_14, %c0_15], %27 {strides = array<i32>} : memref<4x256xf32, #tpu.memory_space<vmem>>, vector<4x256xf32>,
    %cst_16 = arith.constant 0.000000e+00 : f32
    %29 = vector.broadcast %cst_16 : f32 to vector<4x256xf32>
    %30 = arith.select %10, %14, %29 : vector<4x256xi1>, vector<4x256xf32>
    %cst_17 = arith.constant dense<0.000000e+00> : vector<256xf32>
    %31 = vector.multi_reduction <add>, %30, %cst_17 [0] : vector<4x256xf32> to vector<256xf32>
    %32 = vector.shape_cast %31 : vector<256xf32> to vector<1x256xf32>
    %c0_18 = arith.constant 0 : index
    %c0_19 = arith.constant 0 : index
    %33 = vector.load %arg10[%c0_18, %c0_19] : memref<1x256xf32, #tpu.memory_space<vmem>>, vector<1x256xf32>
    %34 = math.log %17 : vector<1x256xf32>
    %35 = arith.subf %34, %32 : vector<1x256xf32>
    %36 = arith.addf %33, %35 : vector<1x256xf32>
    %c0_20 = arith.constant 0 : index
    %c0_21 = arith.constant 0 : index
    %37 = vector.load %arg10[%c0_20, %c0_21] : memref<1x256xf32, #tpu.memory_space<vmem>>, vector<1x256xf32>
    tpu.vector_store %arg10[%c0_20, %c0_21], %36 {strides = array<i32>} : memref<1x256xf32, #tpu.memory_space<vmem>>, vector<1x256xf32>,
    %c0_i32_22 = arith.constant 0 : i32
    %38 = arith.cmpi eq, %arg2, %c0_i32_22 : i32
    %39 = arith.extui %38 : i1 to i32
    %c0_i32_23 = arith.constant 0 : i32
    %40 = arith.cmpi ne, %39, %c0_i32_23 : i32
    scf.if %40 {
      %c0_24 = arith.constant 0 : index
      %c0_25 = arith.constant 0 : index
      %41 = vector.load %arg8[%c0_24, %c0_25] : memref<4x256xf32, #tpu.memory_space<vmem>>, vector<4x256xf32>
      %cst_26 = arith.constant dense<0.000000e+00> : vector<4xf32>
      %42 = vector.multi_reduction <add>, %41, %cst_26 [1] : vector<4x256xf32> to vector<4xf32>
      %43 = vector.shape_cast %42 : vector<4xf32> to vector<4x1xf32>
      %c0_27 = arith.constant 0 : index
      %c0_28 = arith.constant 0 : index
      %c0_29 = arith.constant 0 : index
      %44 = vector.load %arg5[%c0_27, %c0_28, %c0_29] : memref<1x4x1xf32, #tpu.memory_space<vmem>>, vector<1x4x1xf32>
      %45 = vector.shape_cast %44 : vector<1x4x1xf32> to vector<4x1xf32>
      %46 = vector.shape_cast %43 : vector<4x1xf32> to vector<1x4x1xf32>
      tpu.vector_store %arg5[%c0_27, %c0_28, %c0_29], %46 {strides = array<i32>} : memref<1x4x1xf32, #tpu.memory_space<vmem>>, vector<1x4x1xf32>,
      %c0_30 = arith.constant 0 : index
      %c0_31 = arith.constant 0 : index
      %47 = vector.load %arg9[%c0_30, %c0_31] : memref<4x256xf32, #tpu.memory_space<vmem>>, vector<4x256xf32>
      %cst_32 = arith.constant dense<0.000000e+00> : vector<4xf32>
      %48 = vector.multi_reduction <add>, %47, %cst_32 [1] : vector<4x256xf32> to vector<4xf32>
      %49 = vector.shape_cast %48 : vector<4xf32> to vector<4x1xf32>
      %c0_33 = arith.constant 0 : index
      %c0_34 = arith.constant 0 : index
      %c0_35 = arith.constant 0 : index
      %50 = vector.load %arg6[%c0_33, %c0_34, %c0_35] : memref<1x4x1xf32, #tpu.memory_space<vmem>>, vector<1x4x1xf32>
      %51 = vector.shape_cast %50 : vector<1x4x1xf32> to vector<4x1xf32>
      %52 = vector.shape_cast %49 : vector<4x1xf32> to vector<1x4x1xf32>
      tpu.vector_store %arg6[%c0_33, %c0_34, %c0_35], %52 {strides = array<i32>} : memref<1x4x1xf32, #tpu.memory_space<vmem>>, vector<1x4x1xf32>,
      %c0_36 = arith.constant 0 : index
      %c0_37 = arith.constant 0 : index
      %53 = vector.load %arg10[%c0_36, %c0_37] : memref<1x256xf32, #tpu.memory_space<vmem>>, vector<1x256xf32>
      %cst_38 = arith.constant dense<0.000000e+00> : vector<1xf32>
      %54 = vector.multi_reduction <add>, %53, %cst_38 [1] : vector<1x256xf32> to vector<1xf32>
      %55 = vector.shape_cast %54 : vector<1xf32> to vector<1x1xf32>
      %c0_39 = arith.constant 0 : index
      %c0_40 = arith.constant 0 : index
      %c0_41 = arith.constant 0 : index
      %56 = vector.load %arg7[%c0_39, %c0_40, %c0_41] : memref<1x1x1xf32, #tpu.memory_space<vmem>>, vector<1x1x1xf32>
      %57 = vector.shape_cast %56 : vector<1x1x1xf32> to vector<1x1xf32>
      %58 = vector.shape_cast %55 : vector<1x1xf32> to vector<1x1x1xf32>
      tpu.vector_store %arg7[%c0_39, %c0_40, %c0_41], %58 {strides = array<i32>} : memref<1x1x1xf32, #tpu.memory_space<vmem>>, vector<1x1x1xf32>,
    } else {
    }
    return
  }
  func.func @transform_0(%arg0: i32, %arg1: i32, %arg2: i32) -> (i32, i32, i32) {
    %c1_i32 = arith.constant 1 : i32
    %0 = arith.muli %arg1, %c1_i32 : i32
    %1 = arith.addi %0, %arg2 : i32
    %c0_i32 = arith.constant 0 : i32
    %c0_i32_0 = arith.constant 0 : i32
    return %arg0, %c0_i32, %1 : i32, i32, i32
  }
  func.func @transform_1(%arg0: i32, %arg1: i32, %arg2: i32) -> (i32, i32, i32) {
    %c1_i32 = arith.constant 1 : i32
    %0 = arith.muli %arg1, %c1_i32 : i32
    %1 = arith.addi %0, %arg2 : i32
    %c0_i32 = arith.constant 0 : i32
    %c0_i32_0 = arith.constant 0 : i32
    return %arg0, %c0_i32, %1 : i32, i32, i32
  }
  func.func @transform_2(%arg0: i32, %arg1: i32, %arg2: i32) -> (i32, i32, i32) {
    %c1_i32 = arith.constant 1 : i32
    %0 = arith.muli %arg0, %c1_i32 : i32
    %1 = arith.addi %0, %arg1 : i32
    %c0_i32 = arith.constant 0 : i32
    %c0_i32_0 = arith.constant 0 : i32
    %c0_i32_1 = arith.constant 0 : i32
    return %1, %c0_i32, %c0_i32_0 : i32, i32, i32
  }
  func.func @transform_3(%arg0: i32, %arg1: i32, %arg2: i32) -> (i32, i32, i32) {
    %c1_i32 = arith.constant 1 : i32
    %0 = arith.muli %arg0, %c1_i32 : i32
    %1 = arith.addi %0, %arg1 : i32
    %c0_i32 = arith.constant 0 : i32
    %c0_i32_0 = arith.constant 0 : i32
    %c0_i32_1 = arith.constant 0 : i32
    return %1, %c0_i32, %c0_i32_0 : i32, i32, i32
  }
  func.func @transform_4(%arg0: i32, %arg1: i32, %arg2: i32) -> (i32, i32, i32) {
    %c1_i32 = arith.constant 1 : i32
    %0 = arith.muli %arg0, %c1_i32 : i32
    %1 = arith.addi %0, %arg1 : i32
    %c0_i32 = arith.constant 0 : i32
    %c0_i32_0 = arith.constant 0 : i32
    %c0_i32_1 = arith.constant 0 : i32
    return %1, %c0_i32, %c0_i32_0 : i32, i32, i32
  }
}

</mosaic_0001>

<llo_original>
// kernel: tversky_rce_loss.1
$region0: #{tversky_rce_loss.1}
  #allocation0 [shape = 'u32[]', space=smem, size = 0x4, offset = 0x4, fixed_abs, tag = 'smem constant byte address 0x4 - core index']
  #allocation1 [shape = 'u32[72,128]{1,0:T(1,128)}', space=vmem, size = 0x9000, scoped, tag = 'internal scratch']
  #allocation2 [shape = 'f32[4,256]{1,0:T(4,128)}', space=vmem, size = 0x1000, scoped, tag = 'scratch operand']
  #allocation3 [shape = 'f32[4,256]{1,0:T(4,128)}', space=vmem, size = 0x1000, scoped, tag = 'scratch operand']
  #allocation4 [shape = 'f32[1,256]{1,0:T(1,128)}', space=vmem, size = 0x400, scoped, tag = 'scratch operand']
  %s0 = inlined_call_operand.vmem [shape: f32[2,4,256], index: 0, kind: input, shape index: {}]
  %s1 = inlined_call_operand.vmem [shape: f32[2,1,256], index: 1, kind: input, shape index: {}]
  %s2 = inlined_call_operand.vmem [shape: f32[2,4,1], index: 2, kind: output, shape index: {0}]
  %s3 = inlined_call_operand.vmem [shape: f32[2,4,1], index: 3, kind: output, shape index: {1}]
  %s4 = inlined_call_operand.vmem [shape: f32[2,1,1], index: 4, kind: output, shape index: {2}]
  %5 = xla_tuple %s2, %s3, %s4
  %s6 = sld [smem:[#allocation0]]
  $region65: #{tversky_rce_loss.1} parent=0
    _
  %s8 = ssub.s32 1, %s6
  %s9 = scalar_select 0, %s8, %s6
  loop: start=0, step=1, limit=4
  $region2: #{tversky_rce_loss.1} parent=0 // loop_pre_header
    _
  $region3: #{tversky_rce_loss.1} parent=0 // loop_header
    %s11 = sphi 0, %s15
    %p12 = scmp.ge.s32.totalorder %s11, 4
    %s18 = sphi 0, %s37
    %s19 = sphi 0, %s33
    %s20 = sphi 0, %s29
    %s21 = sphi 0, %s18
    %s22 = sphi 0, %s19
    %s23 = sphi 0, %s20
    %s24 = sphi 0, %s21
    %s25 = sphi 0, %s22
    %s26 = sphi 0, %s23
    %s44 = sphi 0, %s46
    %s47 = sphi 0, %s44
    %s48 = sphi 0, %s47
    %s64 = sphi 0, %s48
    %s74 = sphi 0, %s76
    %s77 = sphi 0, %s74
    %s78 = sphi 0, %s77
    %s94 = sphi 0, %s78
    %s102 = sphi 0, %s104
    %s105 = sphi 0, %s102
    %s106 = sphi 0, %s105
    %s122 = sphi 0, %s106
    %s130 = sphi 0, %s132
    %s133 = sphi 0, %s130
    %s134 = sphi 0, %s133
    %s150 = sphi 0, %s134
    %s158 = sphi 0, %s160
    %s161 = sphi 0, %s158
    %s162 = sphi 0, %s161
    %s178 = sphi 0, %s162
  $region4: #{tversky_rce_loss.1} parent=0 // loop_header_branch
    %14 = sbr.rel (%p12) target = $region8
  $region5: #{tversky_rce_loss.1} parent=0 // loop_body
    %s16 = ssub.s32 %s11, 1
    %s17 = ssub.s32 %s11, 2
    %s27 = sadd.s32 1, %s20
    %p28 = scmp.ge.s32.totalorder %s27, 1
    %s29 = scalar_select %p28, 0, %s27
    %s30 = sadd.s32 1, %s19
    %s31 = scalar_select %p28, %s30, %s19
    %p32 = scmp.ge.s32.totalorder %s31, 1
    %s33 = scalar_select %p32, 0, %s31
    %s34 = sadd.s32 1, %s18
    %s35 = scalar_select %p32, %s34, %s18
    %p36 = scmp.ge.s32.totalorder %s35, 2
    %s37 = scalar_select %p36, 0, %s35
    %s38 = sadd.s32 %s19, %s20
    %s39 = sadd.s32 %s33, %s29
    %s40 = ssub.s32 %s18, %s37
    %s41 = ssub.s32 %s38, %s39
    %s42 = sor.u32 %s40, %s41
    %p43 = scmp.eq.s32.totalorder %s42, 0
    %s45 = sadd.s32 %s44, 1
    %s46 = scalar_select %p43, %s44, %s45
    %p49 = pneg %p43
    %p50 = scmp.eq.s32.totalorder %s11, 1
    %p51 = por %p49, %p50
    %p52 = scmp.ne.s32.totalorder %s44, %s47
    %p53 = scmp.eq.s32.totalorder %s11, 0
    %p54 = por %p52, %p53
    %p55 = scmp.ne.s32.totalorder %s44, %s47
    %p56 = scmp.eq.s32.totalorder %s16, 1
    %p57 = por %p55, %p56
    %p58 = scmp.ne.s32.totalorder %s47, %s48
    %p59 = scmp.eq.s32.totalorder %s16, 0
    %p60 = por %p58, %p59
    %p61 = scmp.ne.s32.totalorder %s47, %s48
    %p62 = scmp.eq.s32.totalorder %s17, 1
    %p63 = por %p61, %p62
    %p65 = scmp.ne.s32.totalorder %s48, %s64
    %p66 = scmp.eq.s32.totalorder %s17, 0
    %p67 = por %p65, %p66
    %s68 = sadd.s32 %s19, %s20
    %s69 = sadd.s32 %s33, %s29
    %s70 = ssub.s32 %s18, %s37
    %s71 = ssub.s32 %s68, %s69
    %s72 = sor.u32 %s70, %s71
    %p73 = scmp.eq.s32.totalorder %s72, 0
    %s75 = sadd.s32 %s74, 1
    %s76 = scalar_select %p73, %s74, %s75
    %p79 = pneg %p73
    %p80 = scmp.eq.s32.totalorder %s11, 1
    %p81 = por %p79, %p80
    %p82 = scmp.ne.s32.totalorder %s74, %s77
    %p83 = scmp.eq.s32.totalorder %s11, 0
    %p84 = por %p82, %p83
    %p85 = scmp.ne.s32.totalorder %s74, %s77
    %p86 = scmp.eq.s32.totalorder %s16, 1
    %p87 = por %p85, %p86
    %p88 = scmp.ne.s32.totalorder %s77, %s78
    %p89 = scmp.eq.s32.totalorder %s16, 0
    %p90 = por %p88, %p89
    %p91 = scmp.ne.s32.totalorder %s77, %s78
    %p92 = scmp.eq.s32.totalorder %s17, 1
    %p93 = por %p91, %p92
    %p95 = scmp.ne.s32.totalorder %s78, %s94
    %p96 = scmp.eq.s32.totalorder %s17, 0
    %p97 = por %p95, %p96
    %s98 = sadd.s32 %s18, %s19
    %s99 = sadd.s32 %s37, %s33
    %s100 = ssub.s32 %s98, %s99
    %p101 = scmp.eq.s32.totalorder %s100, 0
    %s103 = sadd.s32 %s102, 1
    %s104 = scalar_select %p101, %s102, %s103
    %p107 = pneg %p101
    %p108 = scmp.eq.s32.totalorder %s11, 1
    %p109 = por %p107, %p108
    %p110 = scmp.ne.s32.totalorder %s102, %s105
    %p111 = scmp.eq.s32.totalorder %s11, 0
    %p112 = por %p110, %p111
    %p113 = scmp.ne.s32.totalorder %s102, %s105
    %p114 = scmp.eq.s32.totalorder %s16, 1
    %p115 = por %p113, %p114
    %p116 = scmp.ne.s32.totalorder %s105, %s106
    %p117 = scmp.eq.s32.totalorder %s16, 0
    %p118 = por %p116, %p117
    %p119 = scmp.ne.s32.totalorder %s105, %s106
    %p120 = scmp.eq.s32.totalorder %s17, 1
    %p121 = por %p119, %p120
    %p123 = scmp.ne.s32.totalorder %s106, %s122
    %p124 = scmp.eq.s32.totalorder %s17, 0
    %p125 = por %p123, %p124
    %s126 = sadd.s32 %s18, %s19
    %s127 = sadd.s32 %s37, %s33
    %s128 = ssub.s32 %s126, %s127
    %p129 = scmp.eq.s32.totalorder %s128, 0
    %s131 = sadd.s32 %s130, 1
    %s132 = scalar_select %p129, %s130, %s131
    %p135 = pneg %p129
    %p136 = scmp.eq.s32.totalorder %s11, 1
    %p137 = por %p135, %p136
    %p138 = scmp.ne.s32.totalorder %s130, %s133
    %p139 = scmp.eq.s32.totalorder %s11, 0
    %p140 = por %p138, %p139
    %p141 = scmp.ne.s32.totalorder %s130, %s133
    %p142 = scmp.eq.s32.totalorder %s16, 1
    %p143 = por %p141, %p142
    %p144 = scmp.ne.s32.totalorder %s133, %s134
    %p145 = scmp.eq.s32.totalorder %s16, 0
    %p146 = por %p144, %p145
    %p147 = scmp.ne.s32.totalorder %s133, %s134
    %p148 = scmp.eq.s32.totalorder %s17, 1
    %p149 = por %p147, %p148
    %p151 = scmp.ne.s32.totalorder %s134, %s150
    %p152 = scmp.eq.s32.totalorder %s17, 0
    %p153 = por %p151, %p152
    %s154 = sadd.s32 %s18, %s19
    %s155 = sadd.s32 %s37, %s33
    %s156 = ssub.s32 %s154, %s155
    %p157 = scmp.eq.s32.totalorder %s156, 0
    %s159 = sadd.s32 %s158, 1
    %s160 = scalar_select %p157, %s158, %s159
    %p163 = pneg %p157
    %p164 = scmp.eq.s32.totalorder %s11, 1
    %p165 = por %p163, %p164
    %p166 = scmp.ne.s32.totalorder %s158, %s161
    %p167 = scmp.eq.s32.totalorder %s11, 0
    %p168 = por %p166, %p167
    %p169 = scmp.ne.s32.totalorder %s158, %s161
    %p170 = scmp.eq.s32.totalorder %s16, 1
    %p171 = por %p169, %p170
    %p172 = scmp.ne.s32.totalorder %s161, %s162
    %p173 = scmp.eq.s32.totalorder %s16, 0
    %p174 = por %p172, %p173
    %p175 = scmp.ne.s32.totalorder %s161, %s162
    %p176 = scmp.eq.s32.totalorder %s17, 1
    %p177 = por %p175, %p176
    %p179 = scmp.ne.s32.totalorder %s162, %s178
    %p180 = scmp.eq.s32.totalorder %s17, 0
    %p181 = por %p179, %p180
    %p182 = scmp.le.s32.totalorder 1, %s11
    %p183 = scmp.lt.s32.totalorder %s11, 3
    %p184 = pnand %p182, %p183
    %p185 = pneg %p184
    // Predicated region
    $region9: #{tversky_rce_loss.1} parent=5 // pred_check
      _
    $region10: #{tversky_rce_loss.1} parent=5 // pred_check_branch
      %187 = sbr.rel (%p184) target = $region12
    $region11: #{tversky_rce_loss.1} parent=5 // pred_region
      %s188 = ssub.s32 %s11, 1
    $region12: #{tversky_rce_loss.1} parent=5 // pred_fallthru
      _
    %p189 = scmp.lt.s32.totalorder %s11, 2
    // Predicated region
    $region13: #{tversky_rce_loss.1} parent=5 // pred_check
      %p190 = pneg %p189
    $region14: #{tversky_rce_loss.1} parent=5 // pred_check_branch
      %192 = sbr.rel (%p190) target = $region16
    $region15: #{tversky_rce_loss.1} parent=5 // pred_region
      // Predicated region
      $region17: #{tversky_rce_loss.1} parent=15 // pred_check
        %p193 = pneg %p54
      $region18: #{tversky_rce_loss.1} parent=15 // pred_check_branch
        %195 = sbr.rel (%p193) target = $region20
      $region19: #{tversky_rce_loss.1} parent=15 // pred_region
        %s196 = sadd.s32 %s19, %s20
        %s197 = smul.u32 2, %s196
        %p198 = scmp.lt.s32.totalorder %s18, 1
        %s199 = scalar_select %p198, %s18, 1
        %p200 = scmp.lt.s32.totalorder %s197, 1
        %s201 = scalar_select %p200, %s197, 1
        %s202 = smul.addr %s199, 2
        %s203 = sadd.s32 %s201, %s202
        %s204 = smul.addr %s203, 4
        %s205 = scalar_lea.vmem %s0, %s204
        %s206 = sadd.s32 %s19, %s20
        %s207 = smul.u32 2, %s206
      $region20: #{tversky_rce_loss.1} parent=15 // pred_fallthru
        _
      // Predicated region
      $region21: #{tversky_rce_loss.1} parent=15 // pred_check
        %p208 = pneg %p84
      $region22: #{tversky_rce_loss.1} parent=15 // pred_check_branch
        %210 = sbr.rel (%p208) target = $region24
      $region23: #{tversky_rce_loss.1} parent=15 // pred_region
        %s211 = sadd.s32 %s19, %s20
        %s212 = smul.u32 2, %s211
        %p213 = scmp.lt.s32.totalorder %s18, 1
        %s214 = scalar_select %p213, %s18, 1
        %p215 = scmp.lt.s32.totalorder %s212, 1
        %s216 = scalar_select %p215, %s212, 1
        %s217 = smul.addr %s214, 2
        %s218 = sadd.s32 %s216, %s217
        %s219 = scalar_lea.vmem %s1, %s218
        %s220 = sadd.s32 %s19, %s20
        %s221 = smul.u32 2, %s220
      $region24: #{tversky_rce_loss.1} parent=15 // pred_fallthru
        _
    $region16: #{tversky_rce_loss.1} parent=5 // pred_fallthru
      _
    %p222 = scmp.le.s32.totalorder 1, %s11
    %p223 = scmp.lt.s32.totalorder %s11, 3
    %p224 = pnand %p222, %p223
    %p225 = pneg %p224
    // Predicated region
    $region25: #{tversky_rce_loss.1} parent=5 // pred_check
      _
    $region26: #{tversky_rce_loss.1} parent=5 // pred_check_branch
      %227 = sbr.rel (%p224) target = $region28
    $region27: #{tversky_rce_loss.1} parent=5 // pred_region
      %s228 = ssub.s32 %s11, 1
      %s229 = sadd.s32 %s22, %s23
      %s230 = smul.u32 2, %s229
      %p231 = scmp.lt.s32.totalorder %s21, 1
      %s232 = scalar_select %p231, %s21, 1
      %p233 = scmp.lt.s32.totalorder %s230, 1
      %s234 = scalar_select %p233, %s230, 1
      %s235 = smul.addr %s232, 2
      %s236 = sadd.s32 %s234, %s235
      %s237 = smul.addr %s236, 4
      %s238 = scalar_lea.vmem %s0, %s237
      %p239 = pneg %p60
      %p240 = pneg %p57
      %s241 = sadd.s32 %s22, %s23
      %s242 = smul.u32 2, %s241
      %p243 = scmp.lt.s32.totalorder %s21, 1
      %s244 = scalar_select %p243, %s21, 1
      %p245 = scmp.lt.s32.totalorder %s242, 1
      %s246 = scalar_select %p245, %s242, 1
      %s247 = smul.addr %s244, 2
      %s248 = sadd.s32 %s246, %s247
      %s249 = scalar_lea.vmem %s1, %s248
      %p250 = pneg %p90
      %p251 = pneg %p87
      %p252 = pneg %p118
      %p253 = pneg %p115
      %s254 = sadd.s32 %s21, %s22
      %p255 = scmp.lt.s32.totalorder %s254, 1
      %s256 = scalar_select %p255, %s254, 1
      %s257 = smul.addr %s256, 4
      %s258 = scalar_lea.vmem %s2, %s257
      %p259 = pneg %p146
      %p260 = pneg %p143
      %s261 = sadd.s32 %s21, %s22
      %p262 = scmp.lt.s32.totalorder %s261, 1
      %s263 = scalar_select %p262, %s261, 1
      %s264 = smul.addr %s263, 4
      %s265 = scalar_lea.vmem %s3, %s264
      %p266 = pneg %p174
      %p267 = pneg %p171
      %s268 = sadd.s32 %s21, %s22
      %p269 = scmp.lt.s32.totalorder %s268, 1
      %s270 = scalar_select %p269, %s268, 1
      %s271 = scalar_lea.vmem %s4, %s270
      %s272 = sadd.s32 %s22, %s23
      %s273 = smul.u32 2, %s272
      %p274 = scmp.lt.s32.totalorder %s21, 1
      %s275 = scalar_select %p274, %s21, 1
      %p276 = scmp.lt.s32.totalorder %s273, 1
      %s277 = scalar_select %p276, %s273, 1
      %s278 = smul.addr %s275, 2
      %s279 = sadd.s32 %s277, %s278
      %s280 = smul.addr %s279, 4
      %s281 = scalar_lea.vmem %s0, %s280
      %s282 = sadd.s32 %s22, %s23
      %s283 = smul.u32 2, %s282
      %s284 = sadd.s32 %s22, %s23
      %s285 = smul.u32 2, %s284
      %p286 = scmp.lt.s32.totalorder %s21, 1
      %s287 = scalar_select %p286, %s21, 1
      %p288 = scmp.lt.s32.totalorder %s285, 1
      %s289 = scalar_select %p288, %s285, 1
      %s290 = smul.addr %s287, 2
      %s291 = sadd.s32 %s289, %s290
      %s292 = scalar_lea.vmem %s1, %s291
      %s293 = sadd.s32 %s22, %s23
      %s294 = smul.u32 2, %s293
      %s295 = sadd.s32 %s21, %s22
      %p296 = scmp.lt.s32.totalorder %s295, 1
      %s297 = scalar_select %p296, %s295, 1
      %s298 = smul.addr %s297, 4
      %s299 = scalar_lea.vmem %s2, %s298
      %s300 = sadd.s32 %s21, %s22
      %s301 = sadd.s32 %s21, %s22
      %p302 = scmp.lt.s32.totalorder %s301, 1
      %s303 = scalar_select %p302, %s301, 1
      %s304 = smul.addr %s303, 4
      %s305 = scalar_lea.vmem %s3, %s304
      %s306 = sadd.s32 %s21, %s22
      %s307 = sadd.s32 %s21, %s22
      %p308 = scmp.lt.s32.totalorder %s307, 1
      %s309 = scalar_select %p308, %s307, 1
      %s310 = scalar_lea.vmem %s4, %s309
      %s311 = sadd.s32 %s21, %s22
      %p312 = scmp.eq.s32.totalorder %s23, 0
      // Predicated region
      $region29: #{tversky_rce_loss.1} parent=27 // pred_check
        %p313 = pneg %p312
      $region30: #{tversky_rce_loss.1} parent=27 // pred_check_branch
        %315 = sbr.rel (%p313) target = $region32
      $region31: #{tversky_rce_loss.1} parent=27 // pred_region
        %316 = vst [vmem:[#allocation2] sm:$0xff] 0.0
        %317 = vst [vmem:[#allocation3] sm:$0xff] 0.0
        %v318 = vlaneseq
        %vm319 = vcmp.ge.s32.totalorder %v318, 0
        %vm320 = vcmp.lt.s32.totalorder %v318, 256
        %vm321 = vmand %vm319, %vm320
        %322 = vst.msk [vmem:[#allocation4] sm:$0x3] %vm321, 0.0
      $region32: #{tversky_rce_loss.1} parent=27 // pred_fallthru
        _
      %v323 = vld [vmem:[%s281] sm:$0xff]
      %v324 = vld [vmem:[%s292] sm:$0x3]
      %v325 = vcvt.f32.s32.to.zero.pseudo %v324
      %v326 = vlaneseq
      %v327 = vshrl.u32 %v326, 7
      %v328 = vperm.slane %v325, 0
      %v329 = vperm.slane %v325, 1
      %vm330 = vcmp.eq.s32.totalorder %v327, %v328
      %vm331 = vcmp.eq.s32.totalorder %v327, %v329
      %333 = vst [vmem:[#allocation1] ss:$2 sm:$0xff] %v323
      %v334 = vld.sshfl [vmem:[#allocation1] sm:$0xff pattern:$0x75316420]
      %v335 = vld.sshfl [vmem:[#allocation1 + $0x8] sm:$0xff pattern:$0x75316420]
      %vm338 = vcmask 1043456
      %v339 = vsel %vm338, %v334, -inf
      %v340 = vrot.slane %v339, 4
      %v341 = vmax.f32 %v339, %v340
      %v342 = vrot.slane %v341, 2
      %v343 = vmax.f32 %v341, %v342
      %v344 = vrot.slane %v343, 1
      %v345 = vmax.f32 %v343, %v344
      %v346 = vsel %vm338, %v335, -inf
      %v347 = vrot.slane %v346, 4
      %v348 = vmax.f32 %v346, %v347
      %v349 = vrot.slane %v348, 2
      %v350 = vmax.f32 %v348, %v349
      %v351 = vrot.slane %v350, 1
      %v352 = vmax.f32 %v350, %v351
      %v355 = vrot.slane %v352, 4
      %v356 = vsel %vm338, %v345, %v355
      %v358 = vsub.f32 %v323, %v356
      %v359 = vmul.f32 %v358, 1.442695
      %v360 = vpow.pop %v359
      %362 = vst [vmem:[#allocation1] ss:$2 sm:$0xff] %v360
      %v363 = vld.sshfl [vmem:[#allocation1] sm:$0xff pattern:$0x75316420]
      %v364 = vld.sshfl [vmem:[#allocation1 + $0x8] sm:$0xff pattern:$0x75316420]
      %v367 = vsel %vm338, %v363, 0.0
      %v368 = vrot.slane %v367, 4
      %v369 = vadd.f32 %v367, %v368
      %v370 = vrot.slane %v369, 2
      %v371 = vadd.f32 %v369, %v370
      %v372 = vrot.slane %v371, 1
      %v373 = vadd.f32 %v371, %v372
      %v374 = vsel %vm338, %v364, 0.0
      %v375 = vrot.slane %v374, 4
      %v376 = vadd.f32 %v374, %v375
      %v377 = vrot.slane %v376, 2
      %v378 = vadd.f32 %v376, %v377
      %v379 = vrot.slane %v378, 1
      %v380 = vadd.f32 %v378, %v379
      %v381 = vrcp.pop %v373
      %v382 = vrcp.pop %v380
      %v385 = vrot.slane %v382, 4
      %v386 = vsel %vm338, %v381, %v385
      %v388 = vmul.f32 %v360, %v386
      %v389 = vld [vmem:[#allocation2] sm:$0xff]
      %391 = vst [vmem:[#allocation1] ss:$2 sm:$0xff] %v388
      %v392 = vld.sshfl [vmem:[#allocation1] sm:$0xff pattern:$0x75316420]
      %v393 = vld.sshfl [vmem:[#allocation1 + $0x8] sm:$0xff pattern:$0x75316420]
      %v396 = vsel %vm330, %v392, 0.0
      %v397 = vsel %vm331, %v393, 0.0
      %v400 = vrot.slane %v397, 4
      %v401 = vsel %vm338, %v396, %v400
      %v403 = vadd.f32 %v389, %v401
      %404 = vst [vmem:[#allocation2] sm:$0xff] %v403
      %v405 = vld [vmem:[#allocation3] sm:$0xff]
      %v406 = vadd.f32 %v405, %v388
      %407 = vst [vmem:[#allocation3] sm:$0xff] %v406
      %409 = vst [vmem:[#allocation1] ss:$2 sm:$0xff] %v358
      %v410 = vld.sshfl [vmem:[#allocation1] sm:$0xff pattern:$0x75316420]
      %v411 = vld.sshfl [vmem:[#allocation1 + $0x8] sm:$0xff pattern:$0x75316420]
      %v414 = vsel %vm330, %v410, 0.0
      %v415 = vsel %vm331, %v411, 0.0
      %v416 = vsel %vm338, %v414, 0.0
      %v417 = vrot.slane %v416, 4
      %v418 = vadd.f32 %v416, %v417
      %v419 = vrot.slane %v418, 2
      %v420 = vadd.f32 %v418, %v419
      %v421 = vrot.slane %v420, 1
      %v422 = vadd.f32 %v420, %v421
      %v423 = vsel %vm338, %v415, 0.0
      %v424 = vrot.slane %v423, 4
      %v425 = vadd.f32 %v423, %v424
      %v426 = vrot.slane %v425, 2
      %v427 = vadd.f32 %v425, %v426
      %v428 = vrot.slane %v427, 1
      %v429 = vadd.f32 %v427, %v428
      %v430 = vld [vmem:[#allocation4] sm:$0x3]
      %v431 = vlog2.pop %v373
      %v432 = vmul.f32 %v431, 0.6931472
      %v433 = vlog2.pop %v380
      %v434 = vmul.f32 %v433, 0.6931472
      %v435 = vsub.f32 %v432, %v422
      %v436 = vsub.f32 %v434, %v429
      %v439 = vrot.slane %v436, 7
      %vm440 = vcmask 1040384
      %v441 = vsel %vm440, %v435, %v439
      %v443 = vadd.f32 %v430, %v441
      %v444 = vlaneseq
      %vm445 = vcmp.ge.s32.totalorder %v444, 0
      %vm446 = vcmp.lt.s32.totalorder %v444, 256
      %vm447 = vmand %vm445, %vm446
      %448 = vst.msk [vmem:[#allocation4] sm:$0x3] %vm447, %v443
      // Predicated region
      $region33: #{tversky_rce_loss.1} parent=27 // pred_check
        %p449 = pneg %p312
      $region34: #{tversky_rce_loss.1} parent=27 // pred_check_branch
        %451 = sbr.rel (%p449) target = $region36
      $region35: #{tversky_rce_loss.1} parent=27 // pred_region
        %v452 = vld [vmem:[#allocation2] sm:$0xff]
        %454 = vst [vmem:[#allocation1] ss:$2 sm:$0xff] %v452
        %v455 = vld.sshfl [vmem:[#allocation1] sm:$0xff pattern:$0x75316420]
        %v456 = vld.sshfl [vmem:[#allocation1 + $0x8] sm:$0xff pattern:$0x75316420]
        %v459 = vsel %vm338, %v455, 0.0
        %v460 = vsel %vm338, %v456, 0.0
        %v461 = vadd.f32 %v459, %v460
        %462 = vadd.xlane.f32.xlu0 %v461
        %v463 = vpop.xlane.xlu0 %462
        %vm464 = vcmask 3072
        %465 = vst.msk [vmem:[%s299] sm:$0xf] %vm464, %v463
        %v466 = vld [vmem:[#allocation3] sm:$0xff]
        %468 = vst [vmem:[#allocation1] ss:$2 sm:$0xff] %v466
        %v469 = vld.sshfl [vmem:[#allocation1] sm:$0xff pattern:$0x75316420]
        %v470 = vld.sshfl [vmem:[#allocation1 + $0x8] sm:$0xff pattern:$0x75316420]
        %v473 = vsel %vm338, %v469, 0.0
        %v474 = vsel %vm338, %v470, 0.0
        %v475 = vadd.f32 %v473, %v474
        %476 = vadd.xlane.f32.xlu0 %v475
        %v477 = vpop.xlane.xlu0 %476
        %478 = vst.msk [vmem:[%s305] sm:$0xf] %vm464, %v477
        %v479 = vld [vmem:[#allocation4] sm:$0x3]
        %v481 = vperm.slane %v479, 0
        %v482 = vperm.slane %v479, 1
        %v485 = vsel %vm440, %v481, 0.0
        %v486 = vsel %vm440, %v482, 0.0
        %v487 = vadd.f32 %v485, %v486
        %488 = vadd.xlane.f32.xlu0 %v487
        %v489 = vpop.xlane.xlu0 %488
        %vm490 = vcmask 0
        %491 = vst.msk [vmem:[%s310] sm:$0x1] %vm490, %v489
      $region36: #{tversky_rce_loss.1} parent=27 // pred_fallthru
        _
      %s492 = sadd.s32 %s21, %s22
      %p493 = scmp.lt.s32.totalorder %s492, 1
      %s494 = scalar_select %p493, %s492, 1
      %s495 = smul.addr %s494, 4
      %s496 = scalar_lea.vmem %s2, %s495
      %s497 = sadd.s32 %s21, %s22
      %p498 = scmp.lt.s32.totalorder %s497, 1
      %s499 = scalar_select %p498, %s497, 1
      %s500 = smul.addr %s499, 4
      %s501 = scalar_lea.vmem %s3, %s500
      %s502 = sadd.s32 %s21, %s22
      %p503 = scmp.lt.s32.totalorder %s502, 1
      %s504 = scalar_select %p503, %s502, 1
      %s505 = scalar_lea.vmem %s4, %s504
      // Predicated region
      $region37: #{tversky_rce_loss.1} parent=27 // pred_check
        %p506 = pneg %p115
      $region38: #{tversky_rce_loss.1} parent=27 // pred_check_branch
        %508 = sbr.rel (%p506) target = $region40
      $region39: #{tversky_rce_loss.1} parent=27 // pred_region
        %s509 = sadd.s32 %s21, %s22
      $region40: #{tversky_rce_loss.1} parent=27 // pred_fallthru
        _
      // Predicated region
      $region41: #{tversky_rce_loss.1} parent=27 // pred_check
        %p510 = pneg %p143
      $region42: #{tversky_rce_loss.1} parent=27 // pred_check_branch
        %512 = sbr.rel (%p510) target = $region44
      $region43: #{tversky_rce_loss.1} parent=27 // pred_region
        %s513 = sadd.s32 %s21, %s22
      $region44: #{tversky_rce_loss.1} parent=27 // pred_fallthru
        _
      // Predicated region
      $region45: #{tversky_rce_loss.1} parent=27 // pred_check
        %p514 = pneg %p171
      $region46: #{tversky_rce_loss.1} parent=27 // pred_check_branch
        %516 = sbr.rel (%p514) target = $region48
      $region47: #{tversky_rce_loss.1} parent=27 // pred_region
        %s517 = sadd.s32 %s21, %s22
      $region48: #{tversky_rce_loss.1} parent=27 // pred_fallthru
        _
    $region28: #{tversky_rce_loss.1} parent=5 // pred_fallthru
      _
    %p518 = scmp.le.s32.totalorder 2, %s11
    // Predicated region
    $region49: #{tversky_rce_loss.1} parent=5 // pred_check
      %p519 = pneg %p518
    $region50: #{tversky_rce_loss.1} parent=5 // pred_check_branch
      %521 = sbr.rel (%p519) target = $region52
    $region51: #{tversky_rce_loss.1} parent=5 // pred_region
      %s522 = ssub.s32 %s11, 2
      // Predicated region
      $region53: #{tversky_rce_loss.1} parent=51 // pred_check
        %p523 = pneg %p121
      $region54: #{tversky_rce_loss.1} parent=51 // pred_check_branch
        %525 = sbr.rel (%p523) target = $region56
      $region55: #{tversky_rce_loss.1} parent=51 // pred_region
        %s526 = sadd.s32 %s24, %s25
        %p527 = scmp.lt.s32.totalorder %s526, 1
        %s528 = scalar_select %p527, %s526, 1
        %s529 = smul.addr %s528, 4
        %s530 = scalar_lea.vmem %s2, %s529
      $region56: #{tversky_rce_loss.1} parent=51 // pred_fallthru
        _
      // Predicated region
      $region57: #{tversky_rce_loss.1} parent=51 // pred_check
        %p531 = pneg %p149
      $region58: #{tversky_rce_loss.1} parent=51 // pred_check_branch
        %533 = sbr.rel (%p531) target = $region60
      $region59: #{tversky_rce_loss.1} parent=51 // pred_region
        %s534 = sadd.s32 %s24, %s25
        %p535 = scmp.lt.s32.totalorder %s534, 1
        %s536 = scalar_select %p535, %s534, 1
        %s537 = smul.addr %s536, 4
        %s538 = scalar_lea.vmem %s3, %s537
      $region60: #{tversky_rce_loss.1} parent=51 // pred_fallthru
        _
      // Predicated region
      $region61: #{tversky_rce_loss.1} parent=51 // pred_check
        %p539 = pneg %p177
      $region62: #{tversky_rce_loss.1} parent=51 // pred_check_branch
        %541 = sbr.rel (%p539) target = $region64
      $region63: #{tversky_rce_loss.1} parent=51 // pred_region
        %s542 = sadd.s32 %s24, %s25
        %p543 = scmp.lt.s32.totalorder %s542, 1
        %s544 = scalar_select %p543, %s542, 1
        %s545 = scalar_lea.vmem %s4, %s544
      $region64: #{tversky_rce_loss.1} parent=51 // pred_fallthru
        _
    $region52: #{tversky_rce_loss.1} parent=5 // pred_fallthru
      _
  $region6: #{tversky_rce_loss.1} parent=0 // loop_footer
    %s15 = sadd.s32 1, %s11
  $region7: #{tversky_rce_loss.1} parent=0 // loop_footer_branch
    %10 = sbr.rel target = $region3
  $region8: #{tversky_rce_loss.1} parent=0 // loop_exit
    _

</llo_original>
